<compile_context>
chip_gen: v7x
topology: tpu7x:2x2x1
jax: 0.10.0
libtpu: 0.0.40
codegen_flags: <defaults>
</compile_context>

<pallas_src>
import functools

import jax
import jax.numpy as jnp
from jax.experimental import pallas as pl
from jax.experimental.pallas import tpu as pltpu

KEEP_PROB = 0.3  # np.random.binomial(1, 0.3, max_size) == 1 -> position is KEPT


def word_dropout_kernel(keep_ref, ids_ref, tab_ref, out_ref, acc_ref, *, d_count, bf16_hist):
    # keep_ref : (1, S)    int32  -- shared word-dropout keep mask (1 = keep)
    # ids_ref  : (tb, S)   int32  -- token ids for this batch tile (0 == padding)
    # tab_ref  : (Vt, Dp)  bf16   -- vocab chunk k of the zero-padded embedding table
    #                               (row 0 all-zero; column d_count == 1.0 for real rows)
    # out_ref  : (tb, Dp)  f32    -- per-sentence mean embedding (lane-dense)
    # acc_ref  : (tb, Dp)  f32    -- accumulator, resident across the vocab axis
    k = pl.program_id(1)
    nk = pl.num_programs(1)

    @pl.when(k == 0)
    def _():
        acc_ref[...] = jnp.zeros_like(acc_ref)

    ids = ids_ref[...]                                   # (tb, S)
    keep = keep_ref[...]                                 # (1, S), broadcasts over batch
    # Fold keep mask + padding filter into the ids: dropped / padding positions map to
    # id 0, whose table row is all-zero (incl. the count column), so they contribute
    # nothing to the accumulated sums -- no full-size select on the one-hot needed.
    ids_k = jnp.where(jnp.logical_and(keep != 0, ids != 0), ids, 0)   # (tb, S)

    tb, S = ids.shape
    Vt, Dp = tab_ref.shape
    base = k * Vt

    # Local one-hot against this vocab chunk, 3-D broadcast form (Vt on lanes, S on
    # sublanes -- no lane<->sublane reshape), collapsed over S into a per-batch histogram.
    iota = jax.lax.broadcasted_iota(jnp.int32, (tb, S, Vt), 2) + base
    onehot = (ids_k[:, :, None] == iota).astype(jnp.float32)          # (tb, S, Vt)
    hist = jnp.sum(onehot, axis=1)                                    # (tb, Vt), exact counts

    table = tab_ref[...]                                              # (Vt, Dp) bf16
    if bf16_hist:
        # counts <= S <= 256 are exact in bf16 -> MXU-native bf16 x bf16, f32 accumulate
        acc_ref[...] += jnp.dot(hist.astype(jnp.bfloat16), table,
                                preferred_element_type=jnp.float32)
    else:
        acc_ref[...] += jnp.dot(hist, table.astype(jnp.float32),
                                preferred_element_type=jnp.float32)

    @pl.when(k == nk - 1)
    def _():
        total = acc_ref[...]                                          # (tb, Dp)
        count = total[:, d_count:d_count + 1]                         # count came out of the MXU
        out_ref[...] = jnp.where(count > 0.5, total / jnp.maximum(count, 1.0), 0.0)


def word_dropout_forward(key, token_ids, emb_table, *, training=True,
                         block_b=128, vocab_chunk=512):
    """Returns (B, D) float32 mean embeddings with word dropout (training path)."""
    B, S = token_ids.shape
    V, D = emb_table.shape

    def rup(x, m):
        return (x + m - 1) // m * m

    Dp = rup(D + 1, 128)                     # +1 lane for the piggybacked token count
    Vt = min(rup(vocab_chunk, 128), rup(V, 128))   # per-step vocab chunk (lane-dense)
    Vp = rup(V, Vt)

    tb = min(block_b, rup(B, 8))             # sublane-aligned batch tile
    Bp = rup(B, tb)
    if Bp // tb == 1 and tb > 8:             # give v7x's 2nd TensorCore a grid step
        tb = rup(max(tb // 2, 8), 8)
        Bp = rup(B, tb)

    # Zero padding: padded ids are treated as padding tokens (-> id 0 -> zero row),
    # padded batch rows produce zeros and are sliced off below.
    ids_p = jnp.zeros((Bp, S), jnp.int32).at[:B, :].set(token_ids.astype(jnp.int32))
    tab_p = jnp.zeros((Vp, Dp), jnp.float32)
    tab_p = tab_p.at[:V, :D].set(emb_table.astype(jnp.float32))
    tab_p = tab_p.at[1:V, D].set(1.0)        # count column: 1.0 for every real non-pad row
    tab_p = tab_p.astype(jnp.bfloat16)       # halve table DMA / VMEM; f32 MXU accumulation

    if training:
        keep = jax.random.bernoulli(key, KEEP_PROB, (1, S)).astype(jnp.int32)
    else:
        keep = jnp.ones((1, S), jnp.int32)

    kernel = functools.partial(word_dropout_kernel, d_count=D, bf16_hist=(S <= 256))

    out_p = pl.pallas_call(
        kernel,
        out_shape=jax.ShapeDtypeStruct((Bp, Dp), jnp.float32),
        grid=(Bp // tb, Vp // Vt),
        in_specs=[
            pl.BlockSpec((1, S), lambda i, k: (0, 0)),      # shared keep mask
            pl.BlockSpec((tb, S), lambda i, k: (i, 0)),     # batch tile of ids
            pl.BlockSpec((Vt, Dp), lambda i, k: (k, 0)),    # vocab chunk of the table
        ],
        out_specs=pl.BlockSpec((tb, Dp), lambda i, k: (i, 0)),
        scratch_shapes=[pltpu.VMEM((tb, Dp), jnp.float32)],
        compiler_params=pltpu.CompilerParams(
            dimension_semantics=("parallel", "arbitrary")),
    )(keep, ids_p, tab_p)

    return out_p[:B, :D]


if __name__ == "__main__":
    B, S, V, D = 2, 8, 32, 20  # batch, max seq len, vocab, embedding dim (torch.zeros(20))

    key = jax.random.PRNGKey(0)
    k_ids, k_emb, k_drop = jax.random.split(key, 3)

    # Deterministic token ids; pad the tail of the second sentence with id 0 (padding).
    token_ids = jax.random.randint(k_ids, (B, S), minval=1, maxval=V, dtype=jnp.int32)
    token_ids = token_ids.at[1, 5:].set(0)

    # Deterministic embedding table; row 0 is the padding embedding (all zeros), matching
    # the "emb.sum(axis=1) != 0" filter semantics of the reference module.
    emb_table = jax.random.normal(k_emb, (V, D), dtype=jnp.float32)
    emb_table = emb_table.at[0].set(0.0)

    out = word_dropout_forward(k_drop, token_ids, emb_table, training=True)
    out = jax.block_until_ready(out)

    # Pure-JAX reference (same keep-mask draw, bf16-rounded table to match kernel storage).
    keep_mask = jax.random.bernoulli(k_drop, KEEP_PROB, (1, S))
    valid = jnp.logical_and(keep_mask, token_ids != 0)                  # (B, S)
    tab_bf = emb_table.astype(jnp.bfloat16).astype(jnp.float32)
    emb = tab_bf[token_ids]                                             # (B, S, D)
    m = valid[..., None].astype(jnp.float32)
    tot = jnp.sum(emb * m, axis=1)
    cnt = jnp.sum(valid.astype(jnp.float32), axis=1, keepdims=True)
    ref = jnp.where(cnt > 0, tot / jnp.maximum(cnt, 1.0), 0.0)

    assert out.shape == (B, D), out.shape
    assert out.dtype == jnp.float32, out.dtype
    assert bool(jnp.all(jnp.isfinite(out)))
    assert bool(jnp.allclose(out, ref, atol=1e-4, rtol=1e-4)), (out, ref)
    print("KERNEL_OK")
</pallas_src>

<mosaic_0001>
module attributes {stable_mosaic.version = 11 : i64} {
  func.func @word_dropout_kernel(%arg0: i32, %arg1: i32, %arg2: memref<1x8xi32, #tpu.memory_space<vmem>>, %arg3: memref<8x8xi32, #tpu.memory_space<vmem>>, %arg4: memref<128x128xbf16, #tpu.memory_space<vmem>>, %arg5: memref<8x128xf32, #tpu.memory_space<vmem>>, %arg6: memref<8x128xf32, #tpu.memory_space<vmem>>) attributes {dimension_semantics = [#tpu.dimension_semantics<parallel>, #tpu.dimension_semantics<arbitrary>], iteration_bounds = array<i64: 1, 1>, scalar_prefetch = 0 : i64, scratch_operands = 1 : i64, tpu.core_type = #tpu.core_type<tc>, window_params = [{pipeline_mode = #tpu.pipeline_mode<synchronous>, transform_indices = @transform_0, window_bounds = array<i64: 1, 8>}, {transform_indices = @transform_1, window_bounds = array<i64: 8, 8>}, {transform_indices = @transform_2, window_bounds = array<i64: 128, 128>}, {transform_indices = @transform_3, window_bounds = array<i64: 8, 128>}]} {
    %c0_i32 = arith.constant 0 : i32
    %0 = arith.cmpi eq, %arg1, %c0_i32 : i32
    %1 = arith.extui %0 : i1 to i32
    %c0_i32_0 = arith.constant 0 : i32
    %2 = arith.cmpi ne, %1, %c0_i32_0 : i32
    scf.if %2 {
      %cst_16 = arith.constant 0.000000e+00 : f32
      %32 = vector.broadcast %cst_16 : f32 to vector<8x128xf32>
      %c0_17 = arith.constant 0 : index
      %c0_18 = arith.constant 0 : index
      %33 = vector.load %arg6[%c0_17, %c0_18] : memref<8x128xf32, #tpu.memory_space<vmem>>, vector<8x128xf32>
      tpu.vector_store %arg6[%c0_17, %c0_18], %32 {strides = array<i32>} : memref<8x128xf32, #tpu.memory_space<vmem>>, vector<8x128xf32>,
    } else {
    }
    %c0 = arith.constant 0 : index
    %c0_1 = arith.constant 0 : index
    %3 = vector.load %arg3[%c0, %c0_1] : memref<8x8xi32, #tpu.memory_space<vmem>>, vector<8x8xi32>
    %c0_2 = arith.constant 0 : index
    %c0_3 = arith.constant 0 : index
    %4 = vector.load %arg2[%c0_2, %c0_3] : memref<1x8xi32, #tpu.memory_space<vmem>>, vector<1x8xi32>
    %c0_i32_4 = arith.constant 0 : i32
    %5 = vector.broadcast %c0_i32_4 : i32 to vector<1x8xi32>
    %6 = arith.cmpi ne, %4, %5 : vector<1x8xi32>
    %c0_i32_5 = arith.constant 0 : i32
    %7 = vector.broadcast %c0_i32_5 : i32 to vector<8x8xi32>
    %8 = arith.cmpi ne, %3, %7 : vector<8x8xi32>
    %9 = vector.broadcast %6 : vector<1x8xi1> to vector<8x8xi1>
    %10 = arith.andi %9, %8 : vector<8x8xi1>
    %c0_i32_6 = arith.constant 0 : i32
    %11 = vector.broadcast %c0_i32_6 : i32 to vector<8x8xi32>
    %12 = arith.select %10, %3, %11 : vector<8x8xi1>, vector<8x8xi32>
    %c128_i32 = arith.constant 128 : i32
    %13 = arith.muli %arg1, %c128_i32 : i32
    %14 = tpu.iota {dimensions = array<i32: 2>} : vector<8x8x128xi32>
    %15 = vector.broadcast %13 : i32 to vector<8x8x128xi32>
    %16 = arith.addi %14, %15 : vector<8x8x128xi32>
    %17 = vector.shape_cast %12 : vector<8x8xi32> to vector<8x8x1xi32>
    %18 = vector.broadcast %17 : vector<8x8x1xi32> to vector<8x8x128xi32>
    %19 = arith.cmpi eq, %18, %16 : vector<8x8x128xi32>
    %20 = arith.extui %19 : vector<8x8x128xi1> to vector<8x8x128xi32>
    %21 = arith.sitofp %20 : vector<8x8x128xi32> to vector<8x8x128xf32>
    %cst = arith.constant dense<0.000000e+00> : vector<8x128xf32>
    %22 = vector.multi_reduction <add>, %21, %cst [1] : vector<8x8x128xf32> to vector<8x128xf32>
    %c0_7 = arith.constant 0 : index
    %c0_8 = arith.constant 0 : index
    %23 = vector.load %arg4[%c0_7, %c0_8] : memref<128x128xbf16, #tpu.memory_space<vmem>>, vector<128x128xbf16>
    %c0_9 = arith.constant 0 : index
    %c0_10 = arith.constant 0 : index
    %24 = vector.load %arg6[%c0_9, %c0_10] : memref<8x128xf32, #tpu.memory_space<vmem>>, vector<8x128xf32>
    %25 = arith.truncf %22 : vector<8x128xf32> to vector<8x128xbf16>
    %cst_11 = arith.constant dense<0.000000e+00> : vector<8x128xf32>
    %26 = tpu.matmul %25, %23, %cst_11 {dimension_numbers = #tpu.dot_dimension_numbers<[1], [0], [0], [1], [0, 0, 1, 1], [], []>} : vector<8x128xbf16>, vector<128x128xbf16>, vector<8x128xf32> -> vector<8x128xf32>
    %27 = arith.addf %24, %26 : vector<8x128xf32>
    %c0_12 = arith.constant 0 : index
    %c0_13 = arith.constant 0 : index
    %28 = vector.load %arg6[%c0_12, %c0_13] : memref<8x128xf32, #tpu.memory_space<vmem>>, vector<8x128xf32>
    tpu.vector_store %arg6[%c0_12, %c0_13], %27 {strides = array<i32>} : memref<8x128xf32, #tpu.memory_space<vmem>>, vector<8x128xf32>,
    %c0_i32_14 = arith.constant 0 : i32
    %29 = arith.cmpi eq, %arg1, %c0_i32_14 : i32
    %30 = arith.extui %29 : i1 to i32
    %c0_i32_15 = arith.constant 0 : i32
    %31 = arith.cmpi ne, %30, %c0_i32_15 : i32
    scf.if %31 {
      %c0_16 = arith.constant 0 : index
      %c0_17 = arith.constant 0 : index
      %32 = vector.load %arg6[%c0_16, %c0_17] : memref<8x128xf32, #tpu.memory_space<vmem>>, vector<8x128xf32>
      %33 = vector.extract_strided_slice %32 {offsets = [0, 20], sizes = [8, 1], strides = [1, 1]} : vector<8x128xf32> to vector<8x1xf32>
      %cst_18 = arith.constant 5.000000e-01 : f32
      %34 = vector.broadcast %cst_18 : f32 to vector<8x1xf32>
      %35 = arith.cmpf ogt, %33, %34 : vector<8x1xf32>
      %cst_19 = arith.constant 1.000000e+00 : f32
      %36 = vector.broadcast %cst_19 : f32 to vector<8x1xf32>
      %37 = arith.maximumf %33, %36 : vector<8x1xf32>
      %38 = vector.broadcast %37 : vector<8x1xf32> to vector<8x128xf32>
      %39 = arith.divf %32, %38 : vector<8x128xf32>
      %cst_20 = arith.constant 0.000000e+00 : f32
      %40 = vector.shape_cast %35 : vector<8x1xi1> to vector<8x1xi1>
      %41 = vector.broadcast %40 : vector<8x1xi1> to vector<8x128xi1>
      %42 = vector.broadcast %cst_20 : f32 to vector<8x128xf32>
      %43 = arith.select %41, %39, %42 : vector<8x128xi1>, vector<8x128xf32>
      %c0_21 = arith.constant 0 : index
      %c0_22 = arith.constant 0 : index
      %44 = vector.load %arg5[%c0_21, %c0_22] : memref<8x128xf32, #tpu.memory_space<vmem>>, vector<8x128xf32>
      tpu.vector_store %arg5[%c0_21, %c0_22], %43 {strides = array<i32>} : memref<8x128xf32, #tpu.memory_space<vmem>>, vector<8x128xf32>,
    } else {
    }
    return
  }
  func.func @transform_0(%arg0: i32, %arg1: i32) -> (i32, i32) {
    %c0_i32 = arith.constant 0 : i32
    %c0_i32_0 = arith.constant 0 : i32
    %c0_i32_1 = arith.constant 0 : i32
    return %c0_i32, %c0_i32_0 : i32, i32
  }
  func.func @transform_1(%arg0: i32, %arg1: i32) -> (i32, i32) {
    %c0_i32 = arith.constant 0 : i32
    %c0_i32_0 = arith.constant 0 : i32
    return %arg0, %c0_i32 : i32, i32
  }
  func.func @transform_2(%arg0: i32, %arg1: i32) -> (i32, i32) {
    %c0_i32 = arith.constant 0 : i32
    %c0_i32_0 = arith.constant 0 : i32
    return %arg1, %c0_i32 : i32, i32
  }
  func.func @transform_3(%arg0: i32, %arg1: i32) -> (i32, i32) {
    %c0_i32 = arith.constant 0 : i32
    %c0_i32_0 = arith.constant 0 : i32
    return %arg0, %c0_i32 : i32, i32
  }
}

</mosaic_0001>

<llo_original>
// kernel: tpu_custom_call.1
$region0: #{tpu_custom_call.1}
  #allocation0 [shape = 'u32[]', space=smem, size = 0x4, offset = 0x4, fixed_abs, tag = 'smem constant byte address 0x4 - core index']
  #allocation1 [shape = 'u32[144,128]{1,0:T(1,128)}', space=vmem, size = 0x12000, scoped, tag = 'internal scratch']
  #allocation2 [shape = 'f32[8,128]{1,0:T(8,128)}', space=vmem, size = 0x1000, scoped, tag = 'scratch operand']
  %s0 = inlined_call_operand.hbm [shape: s32[1,8], index: 0, kind: input, shape index: {}]
  %s1 = inlined_call_operand.hbm [shape: s32[8,8], index: 1, kind: input, shape index: {}]
  %s2 = inlined_call_operand.hbm [shape: bf16[128,128], index: 2, kind: input, shape index: {}]
  %s3 = inlined_call_operand.hbm [shape: f32[8,128], index: 3, kind: output, shape index: {}]
  %s4 = sld [smem:[#allocation0]]
  $region42: #{tpu_custom_call.1} parent=0
    _
  %s6 = ssub.s32 1, %s4
  %s7 = scalar_select 0, %s6, %s4
  $region1: #{tpu_custom_call.1} parent=0
    #allocation3 [shape = 'u8[512]{0}', space=vmem, size = 0x400, scoped, tag = 'input window, operand 0, single buffered']
    #allocation4 [shape = 's32[1]{0}', space=sflag, size = 0x4, scoped, tag = 'scoped memory for tpu_custom_call.1']
    #allocation5 [shape = 's32[1]{0}', space=sflag, size = 0x4, scoped, tag = 'scoped memory for tpu_custom_call.1']
    #allocation6 [shape = 'u8[4096]{0}', space=vmem, size = 0x1000, scoped, tag = 'input window, operand 1, single buffered']
    #allocation7 [shape = 's32[1]{0}', space=sflag, size = 0x4, scoped, tag = 'scoped memory for tpu_custom_call.1']
    #allocation8 [shape = 'u8[32768]{0}', space=vmem, size = 0x8000, scoped, tag = 'input window, operand 2, single buffered']
    #allocation9 [shape = 'u8[4096]{0}', space=vmem, size = 0x1000, scoped, tag = 'output window, operand 0, single buffered']
    %8 = vsyncpa [#allocation4], 0
    %9 = vsyncpa [#allocation7], 0
    %10 = vsyncpa [#allocation5], 0
    // Predicated region
    $region2: #{tpu_custom_call.1} parent=1 // pred_check
      _
    $region3: #{tpu_custom_call.1} parent=1 // pred_check_branch
      %12 = sbr.rel (0) target = $region5
    $region4: #{tpu_custom_call.1} parent=1 // pred_region
      %s14 = ssub.s32 16, 16
      %15 = vsyncadd [#allocation4], %s14
      %s17 = sshll.u32 [#allocation3], 4
      %s18 = int_to_ptr.vmem [resolvable:$true] %s17
      %20 = dma.hbm_to_vmem [thread:$0]  %s0, 16, %s18, [#allocation4]
    $region5: #{tpu_custom_call.1} parent=1 // pred_fallthru
      _
    // Predicated region
    $region6: #{tpu_custom_call.1} parent=1 // pred_check
      _
    $region7: #{tpu_custom_call.1} parent=1 // pred_check_branch
      %22 = sbr.rel (0) target = $region9
    $region8: #{tpu_custom_call.1} parent=1 // pred_region
      %s24 = ssub.s32 128, 128
      %25 = vsyncadd [#allocation7], %s24
      %s27 = sshll.u32 [#allocation6], 4
      %s28 = int_to_ptr.vmem [resolvable:$true] %s27
      %30 = dma.hbm_to_vmem [thread:$0]  %s1, 128, %s28, [#allocation7]
    $region9: #{tpu_custom_call.1} parent=1 // pred_fallthru
      _
    // Predicated region
    $region10: #{tpu_custom_call.1} parent=1 // pred_check
      _
    $region11: #{tpu_custom_call.1} parent=1 // pred_check_branch
      %32 = sbr.rel (0) target = $region13
    $region12: #{tpu_custom_call.1} parent=1 // pred_region
      %s34 = ssub.s32 1024, 1024
      %35 = vsyncadd [#allocation7], %s34
      %s36 = sshll.u32 [#allocation8], 4
      %s37 = int_to_ptr.vmem [resolvable:$true] %s36
      %42 = dma.hbm_to_vmem [thread:$0]  %s2, 1024, %s37, [#allocation7], 64, 64, 4
    $region13: #{tpu_custom_call.1} parent=1 // pred_fallthru
      _
    // Predicated region
    $region14: #{tpu_custom_call.1} parent=1 // pred_check
      _
    $region15: #{tpu_custom_call.1} parent=1 // pred_check_branch
      %44 = sbr.rel (0) target = $region17
    $region16: #{tpu_custom_call.1} parent=1 // pred_region
      %45 = dma.done [#allocation4], 16
    $region17: #{tpu_custom_call.1} parent=1 // pred_fallthru
      _
    // Predicated region
    $region18: #{tpu_custom_call.1} parent=1 // pred_check
      _
    $region19: #{tpu_custom_call.1} parent=1 // pred_check_branch
      %47 = sbr.rel (0) target = $region21
    $region20: #{tpu_custom_call.1} parent=1 // pred_region
      %48 = dma.done [#allocation7], 128
    $region21: #{tpu_custom_call.1} parent=1 // pred_fallthru
      _
    // Predicated region
    $region22: #{tpu_custom_call.1} parent=1 // pred_check
      _
    $region23: #{tpu_custom_call.1} parent=1 // pred_check_branch
      %50 = sbr.rel (0) target = $region25
    $region24: #{tpu_custom_call.1} parent=1 // pred_region
      %51 = dma.done [#allocation7], 1024
    $region25: #{tpu_custom_call.1} parent=1 // pred_fallthru
      _
    %p53 = scmp.eq.s32.totalorder 0, 0
    // Predicated region
    $region26: #{tpu_custom_call.1} parent=1 // pred_check
      %p54 = pneg %p53
    $region27: #{tpu_custom_call.1} parent=1 // pred_check_branch
      %56 = sbr.rel (%p54) target = $region29
    $region28: #{tpu_custom_call.1} parent=1 // pred_region
      %57 = vst [vmem:[#allocation2] sm:$0xff] 0.0
    $region29: #{tpu_custom_call.1} parent=1 // pred_fallthru
      _
    %v58 = vld [vmem:[#allocation6] sm:$0xff]
    %v59 = vld [vmem:[#allocation3] sm:$0x1]
    %vm60 = vcmp.ne.s32.totalorder %v59, 0
    %vm61 = vcmp.ne.s32.totalorder %v58, 0
    %v62 = vsel %vm60, 1, 0
    %v63 = vlaneseq
    %v64 = vshrl.u32 %v63, 7
    %v65 = vsub.s32 0, %v64
    %v66 = vrot.slane %v62, %v65
    %vm67 = vcmp.eq.s32.totalorder %v66, 1
    %vm68 = vmand %vm67, %vm61
    %v69 = vsel %vm68, %v58, 0
    %s70 = smul.u32 0, 128
    %v71 = vlaneseq
    %v72 = vand.u32 %v71, 127
    %v73 = vstv %s70
    %v74 = vadd.s32 %v72, %v73
    %v75 = vlaneseq
    %v76 = vshrl.u32 %v75, 7
    %v77 = vsub.s32 0, %v76
    %v78 = vrot.slane %v69, %v77
    %80 = vbcast.lane.b32.xlu0 %v78, 256
    %v81 = vpop.permute.xlu0 %80
    %v82 = vlaneseq
    %v83 = vshrl.u32 %v82, 7
    %v84 = vsub.s32 1, %v83
    %v85 = vrot.slane %v69, %v84
    %87 = vbcast.lane.b32.xlu0 %v85, 256
    %v88 = vpop.permute.xlu0 %87
    %v89 = vlaneseq
    %v90 = vshrl.u32 %v89, 7
    %v91 = vsub.s32 2, %v90
    %v92 = vrot.slane %v69, %v91
    %94 = vbcast.lane.b32.xlu0 %v92, 256
    %v95 = vpop.permute.xlu0 %94
    %v96 = vlaneseq
    %v97 = vshrl.u32 %v96, 7
    %v98 = vsub.s32 3, %v97
    %v99 = vrot.slane %v69, %v98
    %101 = vbcast.lane.b32.xlu0 %v99, 256
    %v102 = vpop.permute.xlu0 %101
    %v103 = vlaneseq
    %v104 = vshrl.u32 %v103, 7
    %v105 = vsub.s32 4, %v104
    %v106 = vrot.slane %v69, %v105
    %108 = vbcast.lane.b32.xlu0 %v106, 256
    %v109 = vpop.permute.xlu0 %108
    %v110 = vlaneseq
    %v111 = vshrl.u32 %v110, 7
    %v112 = vsub.s32 5, %v111
    %v113 = vrot.slane %v69, %v112
    %115 = vbcast.lane.b32.xlu0 %v113, 256
    %v116 = vpop.permute.xlu0 %115
    %v117 = vlaneseq
    %v118 = vshrl.u32 %v117, 7
    %v119 = vsub.s32 6, %v118
    %v120 = vrot.slane %v69, %v119
    %122 = vbcast.lane.b32.xlu0 %v120, 256
    %v123 = vpop.permute.xlu0 %122
    %v124 = vlaneseq
    %v125 = vshrl.u32 %v124, 7
    %v126 = vsub.s32 7, %v125
    %v127 = vrot.slane %v69, %v126
    %129 = vbcast.lane.b32.xlu0 %v127, 256
    %v130 = vpop.permute.xlu0 %129
    %vm131 = vcmp.eq.s32.totalorder %v81, %v74
    %vm132 = vcmp.eq.s32.totalorder %v88, %v74
    %vm133 = vcmp.eq.s32.totalorder %v95, %v74
    %vm134 = vcmp.eq.s32.totalorder %v102, %v74
    %vm135 = vcmp.eq.s32.totalorder %v109, %v74
    %vm136 = vcmp.eq.s32.totalorder %v116, %v74
    %vm137 = vcmp.eq.s32.totalorder %v123, %v74
    %vm138 = vcmp.eq.s32.totalorder %v130, %v74
    %v139 = vsel %vm131, 1, 0
    %v140 = vsel %vm132, 1, 0
    %v141 = vsel %vm133, 1, 0
    %v142 = vsel %vm134, 1, 0
    %v143 = vsel %vm135, 1, 0
    %v144 = vsel %vm136, 1, 0
    %v145 = vsel %vm137, 1, 0
    %v146 = vsel %vm138, 1, 0
    %v147 = vcvt.s32.f32 %v139
    %v148 = vcvt.s32.f32 %v140
    %v149 = vcvt.s32.f32 %v141
    %v150 = vcvt.s32.f32 %v142
    %v151 = vcvt.s32.f32 %v143
    %v152 = vcvt.s32.f32 %v144
    %v153 = vcvt.s32.f32 %v145
    %v154 = vcvt.s32.f32 %v146
    %v155 = vrot.slane %v147, 4
    %v156 = vadd.f32 %v147, %v155
    %v157 = vrot.slane %v156, 2
    %v158 = vadd.f32 %v156, %v157
    %v159 = vrot.slane %v158, 1
    %v160 = vadd.f32 %v158, %v159
    %v161 = vrot.slane %v148, 4
    %v162 = vadd.f32 %v148, %v161
    %v163 = vrot.slane %v162, 2
    %v164 = vadd.f32 %v162, %v163
    %v165 = vrot.slane %v164, 1
    %v166 = vadd.f32 %v164, %v165
    %v167 = vrot.slane %v149, 4
    %v168 = vadd.f32 %v149, %v167
    %v169 = vrot.slane %v168, 2
    %v170 = vadd.f32 %v168, %v169
    %v171 = vrot.slane %v170, 1
    %v172 = vadd.f32 %v170, %v171
    %v173 = vrot.slane %v150, 4
    %v174 = vadd.f32 %v150, %v173
    %v175 = vrot.slane %v174, 2
    %v176 = vadd.f32 %v174, %v175
    %v177 = vrot.slane %v176, 1
    %v178 = vadd.f32 %v176, %v177
    %v179 = vrot.slane %v151, 4
    %v180 = vadd.f32 %v151, %v179
    %v181 = vrot.slane %v180, 2
    %v182 = vadd.f32 %v180, %v181
    %v183 = vrot.slane %v182, 1
    %v184 = vadd.f32 %v182, %v183
    %v185 = vrot.slane %v152, 4
    %v186 = vadd.f32 %v152, %v185
    %v187 = vrot.slane %v186, 2
    %v188 = vadd.f32 %v186, %v187
    %v189 = vrot.slane %v188, 1
    %v190 = vadd.f32 %v188, %v189
    %v191 = vrot.slane %v153, 4
    %v192 = vadd.f32 %v153, %v191
    %v193 = vrot.slane %v192, 2
    %v194 = vadd.f32 %v192, %v193
    %v195 = vrot.slane %v194, 1
    %v196 = vadd.f32 %v194, %v195
    %v197 = vrot.slane %v154, 4
    %v198 = vadd.f32 %v154, %v197
    %v199 = vrot.slane %v198, 2
    %v200 = vadd.f32 %v198, %v199
    %v201 = vrot.slane %v200, 1
    %v202 = vadd.f32 %v200, %v201
    %v203 = vld [vmem:[#allocation8] sm:$0xf]
    %v204 = vld [vmem:[#allocation8 + $0x4] sm:$0xf]
    %v205 = vld [vmem:[#allocation8 + $0x8] sm:$0xf]
    %v206 = vld [vmem:[#allocation8 + $0xc] sm:$0xf]
    %v207 = vld [vmem:[#allocation8 + $0x10] sm:$0xf]
    %v208 = vld [vmem:[#allocation8 + $0x14] sm:$0xf]
    %v209 = vld [vmem:[#allocation8 + $0x18] sm:$0xf]
    %v210 = vld [vmem:[#allocation8 + $0x1c] sm:$0xf]
    %v211 = vld [vmem:[#allocation8 + $0x20] sm:$0xf]
    %v212 = vld [vmem:[#allocation8 + $0x24] sm:$0xf]
    %v213 = vld [vmem:[#allocation8 + $0x28] sm:$0xf]
    %v214 = vld [vmem:[#allocation8 + $0x2c] sm:$0xf]
    %v215 = vld [vmem:[#allocation8 + $0x30] sm:$0xf]
    %v216 = vld [vmem:[#allocation8 + $0x34] sm:$0xf]
    %v217 = vld [vmem:[#allocation8 + $0x38] sm:$0xf]
    %v218 = vld [vmem:[#allocation8 + $0x3c] sm:$0xf]
    %v219 = vld [vmem:[#allocation2] sm:$0xff]
    %v220 = vpack.c.bf16 %v160, %v160
    %v221 = vpack.c.bf16 %v166, %v166
    %v222 = vpack.c.bf16 %v172, %v172
    %v223 = vpack.c.bf16 %v178, %v178
    %v224 = vpack.c.bf16 %v184, %v184
    %v225 = vpack.c.bf16 %v190, %v190
    %v226 = vpack.c.bf16 %v196, %v196
    %v227 = vpack.c.bf16 %v202, %v202
    %v236 = vunpack.c.l.b16 %v220
    %v237 = vunpack.c.l.b16 %v221
    %v238 = vunpack.c.l.b16 %v222
    %v239 = vunpack.c.l.b16 %v223
    %v240 = vunpack.c.l.b16 %v224
    %v241 = vunpack.c.l.b16 %v225
    %v242 = vunpack.c.l.b16 %v226
    %v243 = vunpack.c.l.b16 %v227
    %vm244 = vcmask 1041409
    %v245 = vsel %vm244, %v237, %v236
    %vm246 = vcmask 1042434
    %v247 = vsel %vm246, %v238, %v245
    %vm248 = vcmask 1043459
    %v249 = vsel %vm248, %v239, %v247
    %vm250 = vcmask 1044484
    %v251 = vsel %vm250, %v240, %v249
    %vm252 = vcmask 1045509
    %v253 = vsel %vm252, %v241, %v251
    %vm254 = vcmask 1046534
    %v255 = vsel %vm254, %v242, %v253
    %vm256 = vcmask 1047559
    %v257 = vsel %vm256, %v243, %v255
    %v258 = vpack.c.b16 %v257, %v257
    %v276 = vunpack.c.l.b16 %v203
    %v277 = vunpack.c.l.b16 %v204
    %v278 = vunpack.c.l.b16 %v205
    %v279 = vunpack.c.l.b16 %v206
    %v280 = vunpack.c.l.b16 %v207
    %v281 = vunpack.c.l.b16 %v208
    %v282 = vunpack.c.l.b16 %v209
    %v283 = vunpack.c.l.b16 %v210
    %v284 = vunpack.c.l.b16 %v211
    %v285 = vunpack.c.l.b16 %v212
    %v286 = vunpack.c.l.b16 %v213
    %v287 = vunpack.c.l.b16 %v214
    %v288 = vunpack.c.l.b16 %v215
    %v289 = vunpack.c.l.b16 %v216
    %v290 = vunpack.c.l.b16 %v217
    %v291 = vunpack.c.l.b16 %v218
    %v292 = vpack.c.b16 %v277, %v276
    %v293 = vpack.c.b16 %v279, %v278
    %v294 = vpack.c.b16 %v281, %v280
    %v295 = vpack.c.b16 %v283, %v282
    %v296 = vpack.c.b16 %v285, %v284
    %v297 = vpack.c.b16 %v287, %v286
    %v298 = vpack.c.b16 %v289, %v288
    %v299 = vpack.c.b16 %v291, %v290
    %308 = vmatprep.subr.bf16.mxu0 0
    %309 = vmatpush1.bf16.msra.mxu0 %v292
    %310 = vmatprep.subr.bf16.mxu0 0
    %311 = vmatpush1.bf16.msra.mxu0 %v293
    %312 = vmatprep.subr.bf16.mxu0 0
    %313 = vmatpush1.bf16.msra.mxu0 %v294
    %314 = vmatprep.subr.bf16.mxu0 0
    %315 = vmatpush1.bf16.msra.mxu0 %v295
    %316 = vmatprep.subr.bf16.mxu0 0
    %317 = vmatpush1.bf16.msra.mxu0 %v296
    %318 = vmatprep.subr.bf16.mxu0 0
    %319 = vmatpush1.bf16.msra.mxu0 %v297
    %320 = vmatprep.subr.bf16.mxu0 0
    %321 = vmatpush1.bf16.msra.mxu0 %v298
    %322 = vmatprep.subr.bf16.mxu0 0
    %323 = vmatpush1.bf16.msra.mxu0 %v299
    %324 = vmatprep.subr.bf16.mxu0 0
    %325 = vmatpush1.bf16.msra.mxu0 0
    %326 = vmatprep.subr.bf16.mxu0 0
    %327 = vmatpush1.bf16.msra.mxu0 0
    %328 = vmatprep.subr.bf16.mxu0 0
    %329 = vmatpush1.bf16.msra.mxu0 0
    %330 = vmatprep.subr.bf16.mxu0 0
    %331 = vmatpush1.bf16.msra.mxu0 0
    %332 = vmatprep.subr.bf16.mxu0 0
    %333 = vmatpush1.bf16.msra.mxu0 0
    %334 = vmatprep.subr.bf16.mxu0 0
    %335 = vmatpush1.bf16.msra.mxu0 0
    %336 = vmatprep.subr.bf16.mxu0 0
    %337 = vmatpush1.bf16.msra.mxu0 0
    %338 = vmatprep.subr.bf16.mxu0 0
    %339 = vmatpush1.bf16.msra.mxu0 0
    %340 = vmatprep.mubr.bf16.mxu0 0
    %341 = vmatmul.mubr.bf16.gmra.mrb[0].mxu0 %v258
    %v342 = vpop.f32.mrb[0].mxu0
    %v343 = vadd.f32 0.0, %v342
    %v344 = vpop.f32.mrb[0].mxu0
    %v345 = vpop.f32.mrb[0].mxu0
    %v346 = vpop.f32.mrb[0].mxu0
    %347 = vdwg.mxu0
    %v348 = vadd.f32 %v219, %v343
    %349 = vst [vmem:[#allocation2] sm:$0xff] %v348
    // Predicated region
    $region30: #{tpu_custom_call.1} parent=1 // pred_check
      %p350 = pneg %p53
    $region31: #{tpu_custom_call.1} parent=1 // pred_check_branch
      %352 = sbr.rel (%p350) target = $region33
    $region32: #{tpu_custom_call.1} parent=1 // pred_region
      %v353 = vld [vmem:[#allocation2] sm:$0xff]
      %vm354 = vcmp.gt.f32.partialorder %v353, 0.5
      %v355 = vmax.f32 %v353, 1.0
      %357 = vset.pattern.permute.xlu0 20
      %358 = vperm.xlu0 %357, %v355
      %v359 = vpop.permute.xlu0 %358
      %v361 = vrcp.pop %v359
      %v362 = vmul.f32 %v353, %v361
      %v363 = vsel %vm354, 1, 0
      %364 = vset.pattern.permute.xlu0 20
      %365 = vperm.xlu0 %364, %v363
      %v366 = vpop.permute.xlu0 %365
      %vm367 = vcmp.eq.s32.totalorder %v366, 1
      %v368 = vsel %vm367, %v362, 0.0
      %369 = vst [vmem:[#allocation9] sm:$0xff] %v368
    $region33: #{tpu_custom_call.1} parent=1 // pred_fallthru
      _
    // Predicated region
    $region34: #{tpu_custom_call.1} parent=1 // pred_check
      _
    $region35: #{tpu_custom_call.1} parent=1 // pred_check_branch
      %371 = sbr.rel (0) target = $region37
    $region36: #{tpu_custom_call.1} parent=1 // pred_region
      %s373 = ssub.s32 128, 128
      %374 = vsyncadd [#allocation5], %s373
      %s376 = sshll.u32 [#allocation9], 4
      %s377 = int_to_ptr.vmem [resolvable:$true] %s376
      %379 = dma.vmem_to_hbm [thread:$0]  %s377, 128, %s3, [#allocation5]
    $region37: #{tpu_custom_call.1} parent=1 // pred_fallthru
      _
    // Predicated region
    $region38: #{tpu_custom_call.1} parent=1 // pred_check
      _
    $region39: #{tpu_custom_call.1} parent=1 // pred_check_branch
      %381 = sbr.rel (0) target = $region41
    $region40: #{tpu_custom_call.1} parent=1 // pred_region
      %382 = dma.done [#allocation5], 128
    $region41: #{tpu_custom_call.1} parent=1 // pred_fallthru
      _
    %383 = vsyncpa [#allocation4], 1
    %384 = vsyncpa [#allocation7], 1
    %385 = vsyncpa [#allocation5], 1

</llo_original>
